<compile_context>
chip_gen: v5e
topology: v5e:2x2
jax: 0.10.0
libtpu: 0.0.40
codegen_flags: <defaults>
</compile_context>

<pallas_src>
import jax
import jax.numpy as jnp
from jax import lax
from jax.experimental import pallas as pl
from jax.experimental.pallas import tpu as pltpu

IMG = 16                         # imgSize (power of 2, per the module)
CIN = 3
COUT = 32                        # numOutputChannels
KH = KW = 5
K = CIN * KH * KW                # 75
KPAD = 128                       # conv contraction padded to a full lane tile
HIDDEN = 64
P = (IMG // 2) * (IMG // 2)      # 64 pooled spatial positions
FEAT = P * COUT                  # 2048 flattened features


# ----------------------------- Pallas kernels ------------------------------

def _conv_relu_pool_kernel(p_ref, w_ref, b_ref, o_ref):
    # p_ref: (1, 4P, KPAD) patch rows, row r = t*P + q (t = 2x2 pool member, q = pooled pos)
    # w_ref: (KPAD, COUT)  conv weight (K zero-padded), b_ref: (1, COUT), o_ref: (1, P, COUT)
    y = jnp.dot(p_ref[0], w_ref[...], preferred_element_type=jnp.float32)   # (4P, COUT) on MXU
    y = jnp.maximum(y + b_ref[...], 0.0)                                    # conv bias + ReLU
    # 2x2 max-pool = elementwise max over the 4 contiguous, 8-aligned row slabs
    o_ref[0] = jnp.maximum(jnp.maximum(y[0:P], y[P:2 * P]),
                           jnp.maximum(y[2 * P:3 * P], y[3 * P:4 * P]))


def _mlp_kernel(f_ref, w1_ref, b1_ref, w2_ref, b2_ref, o_ref):
    # f_ref: (TB, 2048) lane-dense features, w1_ref: (2048, 64) permuted fc1 weight,
    # b1_ref: (1, 64), w2_ref: (1, 64) (PyTorch fc2.weight layout), b2_ref: (1, 1), o_ref: (TB, 1)
    h = jnp.dot(f_ref[...], w1_ref[...], preferred_element_type=jnp.float32)
    h = jnp.maximum(h + b1_ref[...], 0.0)                                   # fc1 + ReLU
    z = jnp.sum(h * w2_ref[...], axis=1, keepdims=True) + b2_ref[...]       # fc2 (out_dim = 1)
    o_ref[...] = 0.5 * (jnp.tanh(0.5 * z) + 1.0)                            # stable sigmoid (EUP)


# ------------------------------- glue (JAX) --------------------------------

def _im2col_pool_order(x):
    """x: (N, C, H, W) -> patches (N, 4*(H//2)*(W//2), KPAD), zero-padded K.

    K-index order is (c, kh, kw) to match conv.weight.reshape(COUT, -1).
    Row order is r = t*P + q with t = dy*2 + dx inside the 2x2 pool window, q = qy*(W//2)+qx.
    """
    N, C, H, W = x.shape
    pad = KH // 2
    xp = jnp.pad(x, ((0, 0), (0, 0), (pad, pad), (pad, pad)))
    cols = [xp[:, :, kh:kh + H, kw:kw + W] for kh in range(KH) for kw in range(KW)]
    p = jnp.stack(cols, axis=2)                                      # (N, C, KH*KW, H, W)
    p = p.transpose(0, 3, 4, 1, 2).reshape(N, H, W, C * KH * KW)     # (N, H, W, K)
    p = p.reshape(N, H // 2, 2, W // 2, 2, C * KH * KW)              # (N, qy, dy, qx, dx, K)
    p = p.transpose(0, 2, 4, 1, 3, 5)                                # (N, dy, dx, qy, qx, K)
    p = p.reshape(N, 4 * (H // 2) * (W // 2), C * KH * KW)
    return jnp.pad(p, ((0, 0), (0, 0), (0, KPAD - C * KH * KW)))     # K: 75 -> 128 (zeros)


def prepare_params(params):
    """One-time host-side weight re-layout (static; not on the activation hot path)."""
    conv_w, conv_b, fc1_w, fc1_b, fc2_w, fc2_b = params
    wc = jnp.pad(conv_w.reshape(COUT, K).T, ((0, KPAD - K), (0, 0)))        # (128, 32)
    bc = conv_b.reshape(1, COUT)
    # Permute fc1 columns: PyTorch flatten index c*P+q  ->  kernel pooled order q*COUT+c,
    # so `feats = pooled.reshape(N, 2048)` needs no transpose / data movement.
    w1p = fc1_w.reshape(HIDDEN, COUT, P).transpose(2, 1, 0).reshape(FEAT, HIDDEN)  # (2048, 64)
    b1 = fc1_b.reshape(1, HIDDEN)
    w2 = fc2_w.reshape(1, HIDDEN)
    b2 = fc2_b.reshape(1, 1)
    return wc, bc, w1p, b1, w2, b2


@jax.jit
def binary_classifier_forward(x, prep):
    wc, bc, w1p, b1, w2, b2 = prep
    N = x.shape[0]

    patches = _im2col_pool_order(x)                                  # (N, 4P, 128)

    pooled = pl.pallas_call(
        _conv_relu_pool_kernel,
        out_shape=jax.ShapeDtypeStruct((N, P, COUT), jnp.float32),
        grid=(N,),                                                   # parallel batch axis (v7x 2 TCs)
        in_specs=[
            pl.BlockSpec((1, 4 * P, KPAD), lambda n: (n, 0, 0)),
            pl.BlockSpec((KPAD, COUT), lambda n: (0, 0)),            # weight resident across steps
            pl.BlockSpec((1, COUT), lambda n: (0, 0)),
        ],
        out_specs=pl.BlockSpec((1, P, COUT), lambda n: (n, 0, 0)),
        compiler_params=pltpu.CompilerParams(dimension_semantics=("parallel",)),
    )(patches, wc, bc)                                               # (N, P, COUT) [q, c]

    # Free row-major reshape (feature index = q*COUT + c, matched by the permuted fc1 weight).
    feats = pooled.reshape(N, FEAT)                                  # (N, 2048), lane-dense

    TB = N if N <= 512 else 512                                      # batch-row tile for the MLP
    out = pl.pallas_call(
        _mlp_kernel,
        out_shape=jax.ShapeDtypeStruct((N, 1), jnp.float32),
        grid=(pl.cdiv(N, TB),),
        in_specs=[
            pl.BlockSpec((TB, FEAT), lambda i: (i, 0)),
            pl.BlockSpec((FEAT, HIDDEN), lambda i: (0, 0)),          # fc1 weight resident
            pl.BlockSpec((1, HIDDEN), lambda i: (0, 0)),
            pl.BlockSpec((1, HIDDEN), lambda i: (0, 0)),
            pl.BlockSpec((1, 1), lambda i: (0, 0)),
        ],
        out_specs=pl.BlockSpec((TB, 1), lambda i: (i, 0)),
        compiler_params=pltpu.CompilerParams(dimension_semantics=("parallel",)),
    )(feats, w1p, b1, w2, b2)
    return out


# --------------------------- pure-JAX reference ----------------------------

def reference_forward(x, params):
    conv_w, conv_b, fc1_w, fc1_b, fc2_w, fc2_b = params
    y = lax.conv_general_dilated(x, conv_w, (1, 1), ((2, 2), (2, 2)),
                                 dimension_numbers=("NCHW", "OIHW", "NCHW"))
    y = jnp.maximum(y + conv_b[None, :, None, None], 0.0)
    y = lax.reduce_window(y, -jnp.inf, lax.max, (1, 1, 2, 2), (1, 1, 2, 2), "VALID")
    f = y.reshape(y.shape[0], -1)
    h = jnp.maximum(f @ fc1_w.T + fc1_b, 0.0)
    z = h @ fc2_w.T + fc2_b
    return jax.nn.sigmoid(z)


# --------------------------------- main -------------------------------------

if __name__ == "__main__":
    key = jax.random.PRNGKey(0)
    ks = jax.random.split(key, 7)

    def u(k, shape, bound):
        return jax.random.uniform(k, shape, jnp.float32, -bound, bound)

    fan_c = CIN * KH * KW
    fc1_in = COUT * (IMG // 2) * (IMG // 2)
    conv_w = u(ks[0], (COUT, CIN, KH, KW), 1.0 / (fan_c ** 0.5))
    conv_b = u(ks[1], (COUT,), 1.0 / (fan_c ** 0.5))
    fc1_w = u(ks[2], (HIDDEN, fc1_in), 1.0 / (fc1_in ** 0.5))
    fc1_b = u(ks[3], (HIDDEN,), 1.0 / (fc1_in ** 0.5))
    fc2_w = u(ks[4], (1, HIDDEN), 1.0 / (HIDDEN ** 0.5))
    fc2_b = u(ks[5], (1,), 1.0 / (HIDDEN ** 0.5))
    params = (conv_w, conv_b, fc1_w, fc1_b, fc2_w, fc2_b)

    prep = prepare_params(params)                 # one-time weight re-layout / padding

    x = jax.random.normal(ks[6], (2, CIN, IMG, IMG), jnp.float32)

    out = binary_classifier_forward(x, prep)
    out = jax.block_until_ready(out)
    assert out.shape == (2, 1), out.shape

    ref = jax.block_until_ready(reference_forward(x, params))
    assert jnp.allclose(out, ref, atol=2e-2, rtol=2e-2), (out, ref)

    print("KERNEL_OK")
</pallas_src>

<mosaic_0001>
module attributes {stable_mosaic.version = 11 : i64} {
  func.func @_conv_relu_pool_kernel(%arg0: i32, %arg1: memref<1x256x128xf32, #tpu.memory_space<vmem>>, %arg2: memref<128x32xf32, #tpu.memory_space<vmem>>, %arg3: memref<1x32xf32, #tpu.memory_space<vmem>>, %arg4: memref<1x64x32xf32, #tpu.memory_space<vmem>>) attributes {dimension_semantics = [#tpu.dimension_semantics<parallel>], iteration_bounds = array<i64: 2>, scalar_prefetch = 0 : i64, scratch_operands = 0 : i64, tpu.core_type = #tpu.core_type<tc>, window_params = [{transform_indices = @transform_0, window_bounds = array<i64: 1, 256, 128>}, {pipeline_mode = #tpu.pipeline_mode<synchronous>, transform_indices = @transform_1, window_bounds = array<i64: 128, 32>}, {pipeline_mode = #tpu.pipeline_mode<synchronous>, transform_indices = @transform_2, window_bounds = array<i64: 1, 32>}, {transform_indices = @transform_3, window_bounds = array<i64: 1, 64, 32>}]} {
    %c0 = arith.constant 0 : index
    %c0_0 = arith.constant 0 : index
    %c0_1 = arith.constant 0 : index
    %0 = vector.load %arg1[%c0, %c0_0, %c0_1] : memref<1x256x128xf32, #tpu.memory_space<vmem>>, vector<1x256x128xf32>
    %1 = vector.shape_cast %0 : vector<1x256x128xf32> to vector<256x128xf32>
    %c0_2 = arith.constant 0 : index
    %c0_3 = arith.constant 0 : index
    %2 = vector.load %arg2[%c0_2, %c0_3] : memref<128x32xf32, #tpu.memory_space<vmem>>, vector<128x32xf32>
    %cst = arith.constant dense<0.000000e+00> : vector<256x32xf32>
    %3 = tpu.matmul %1, %2, %cst {dimension_numbers = #tpu.dot_dimension_numbers<[1], [0], [0], [1], [0, 0, 1, 1], [], []>} : vector<256x128xf32>, vector<128x32xf32>, vector<256x32xf32> -> vector<256x32xf32>
    %c0_4 = arith.constant 0 : index
    %c0_5 = arith.constant 0 : index
    %4 = vector.load %arg3[%c0_4, %c0_5] : memref<1x32xf32, #tpu.memory_space<vmem>>, vector<1x32xf32>
    %5 = vector.broadcast %4 : vector<1x32xf32> to vector<256x32xf32>
    %6 = arith.addf %3, %5 : vector<256x32xf32>
    %cst_6 = arith.constant 0.000000e+00 : f32
    %7 = vector.broadcast %cst_6 : f32 to vector<256x32xf32>
    %8 = arith.maximumf %6, %7 : vector<256x32xf32>
    %9 = vector.extract_strided_slice %8 {offsets = [0, 0], sizes = [64, 32], strides = [1, 1]} : vector<256x32xf32> to vector<64x32xf32>
    %10 = vector.extract_strided_slice %8 {offsets = [64, 0], sizes = [64, 32], strides = [1, 1]} : vector<256x32xf32> to vector<64x32xf32>
    %11 = arith.maximumf %9, %10 : vector<64x32xf32>
    %12 = vector.extract_strided_slice %8 {offsets = [128, 0], sizes = [64, 32], strides = [1, 1]} : vector<256x32xf32> to vector<64x32xf32>
    %13 = vector.extract_strided_slice %8 {offsets = [192, 0], sizes = [64, 32], strides = [1, 1]} : vector<256x32xf32> to vector<64x32xf32>
    %14 = arith.maximumf %12, %13 : vector<64x32xf32>
    %15 = arith.maximumf %11, %14 : vector<64x32xf32>
    %c0_7 = arith.constant 0 : index
    %c0_8 = arith.constant 0 : index
    %c0_9 = arith.constant 0 : index
    %16 = vector.load %arg4[%c0_7, %c0_8, %c0_9] : memref<1x64x32xf32, #tpu.memory_space<vmem>>, vector<1x64x32xf32>
    %17 = vector.shape_cast %16 : vector<1x64x32xf32> to vector<64x32xf32>
    %18 = vector.shape_cast %15 : vector<64x32xf32> to vector<1x64x32xf32>
    tpu.vector_store %arg4[%c0_7, %c0_8, %c0_9], %18 {strides = array<i32>} : memref<1x64x32xf32, #tpu.memory_space<vmem>>, vector<1x64x32xf32>,
    return
  }
  func.func @transform_0(%arg0: i32) -> (i32, i32, i32) {
    %c0_i32 = arith.constant 0 : i32
    %c0_i32_0 = arith.constant 0 : i32
    %c0_i32_1 = arith.constant 0 : i32
    return %arg0, %c0_i32, %c0_i32_0 : i32, i32, i32
  }
  func.func @transform_1(%arg0: i32) -> (i32, i32) {
    %c0_i32 = arith.constant 0 : i32
    %c0_i32_0 = arith.constant 0 : i32
    %c0_i32_1 = arith.constant 0 : i32
    return %c0_i32, %c0_i32_0 : i32, i32
  }
  func.func @transform_2(%arg0: i32) -> (i32, i32) {
    %c0_i32 = arith.constant 0 : i32
    %c0_i32_0 = arith.constant 0 : i32
    %c0_i32_1 = arith.constant 0 : i32
    return %c0_i32, %c0_i32_0 : i32, i32
  }
  func.func @transform_3(%arg0: i32) -> (i32, i32, i32) {
    %c0_i32 = arith.constant 0 : i32
    %c0_i32_0 = arith.constant 0 : i32
    %c0_i32_1 = arith.constant 0 : i32
    return %arg0, %c0_i32, %c0_i32_0 : i32, i32, i32
  }
}

module attributes {stable_mosaic.version = 11 : i64} {
  func.func @_mlp_kernel(%arg0: i32, %arg1: memref<2x2048xf32, #tpu.memory_space<vmem>>, %arg2: memref<2048x64xf32, #tpu.memory_space<vmem>>, %arg3: memref<1x64xf32, #tpu.memory_space<vmem>>, %arg4: memref<1x64xf32, #tpu.memory_space<vmem>>, %arg5: memref<1x1xf32, #tpu.memory_space<vmem>>, %arg6: memref<2x1xf32, #tpu.memory_space<vmem>>) attributes {dimension_semantics = [#tpu.dimension_semantics<parallel>], iteration_bounds = array<i64: 1>, scalar_prefetch = 0 : i64, scratch_operands = 0 : i64, tpu.core_type = #tpu.core_type<tc>, window_params = [{transform_indices = @transform_0, window_bounds = array<i64: 2, 2048>}, {pipeline_mode = #tpu.pipeline_mode<synchronous>, transform_indices = @transform_1, window_bounds = array<i64: 2048, 64>}, {pipeline_mode = #tpu.pipeline_mode<synchronous>, transform_indices = @transform_2, window_bounds = array<i64: 1, 64>}, {pipeline_mode = #tpu.pipeline_mode<synchronous>, transform_indices = @transform_3, window_bounds = array<i64: 1, 64>}, {pipeline_mode = #tpu.pipeline_mode<synchronous>, transform_indices = @transform_4, window_bounds = array<i64: 1, 1>}, {transform_indices = @transform_5, window_bounds = array<i64: 2, 1>}]} {
    %c0 = arith.constant 0 : index
    %c0_0 = arith.constant 0 : index
    %0 = vector.load %arg1[%c0, %c0_0] : memref<2x2048xf32, #tpu.memory_space<vmem>>, vector<2x2048xf32>
    %c0_1 = arith.constant 0 : index
    %c0_2 = arith.constant 0 : index
    %1 = vector.load %arg2[%c0_1, %c0_2] : memref<2048x64xf32, #tpu.memory_space<vmem>>, vector<2048x64xf32>
    %cst = arith.constant dense<0.000000e+00> : vector<2x64xf32>
    %2 = tpu.matmul %0, %1, %cst {dimension_numbers = #tpu.dot_dimension_numbers<[1], [0], [0], [1], [0, 0, 1, 1], [], []>} : vector<2x2048xf32>, vector<2048x64xf32>, vector<2x64xf32> -> vector<2x64xf32>
    %c0_3 = arith.constant 0 : index
    %c0_4 = arith.constant 0 : index
    %3 = vector.load %arg3[%c0_3, %c0_4] : memref<1x64xf32, #tpu.memory_space<vmem>>, vector<1x64xf32>
    %4 = vector.broadcast %3 : vector<1x64xf32> to vector<2x64xf32>
    %5 = arith.addf %2, %4 : vector<2x64xf32>
    %cst_5 = arith.constant 0.000000e+00 : f32
    %6 = vector.broadcast %cst_5 : f32 to vector<2x64xf32>
    %7 = arith.maximumf %5, %6 : vector<2x64xf32>
    %c0_6 = arith.constant 0 : index
    %c0_7 = arith.constant 0 : index
    %8 = vector.load %arg4[%c0_6, %c0_7] : memref<1x64xf32, #tpu.memory_space<vmem>>, vector<1x64xf32>
    %9 = vector.broadcast %8 : vector<1x64xf32> to vector<2x64xf32>
    %10 = arith.mulf %7, %9 : vector<2x64xf32>
    %cst_8 = arith.constant dense<0.000000e+00> : vector<2xf32>
    %11 = vector.multi_reduction <add>, %10, %cst_8 [1] : vector<2x64xf32> to vector<2xf32>
    %12 = vector.shape_cast %11 : vector<2xf32> to vector<2x1xf32>
    %c0_9 = arith.constant 0 : index
    %c0_10 = arith.constant 0 : index
    %13 = vector.load %arg5[%c0_9, %c0_10] : memref<1x1xf32, #tpu.memory_space<vmem>>, vector<1x1xf32>
    %14 = vector.broadcast %13 : vector<1x1xf32> to vector<2x1xf32>
    %15 = arith.addf %12, %14 : vector<2x1xf32>
    %cst_11 = arith.constant 5.000000e-01 : f32
    %16 = vector.broadcast %cst_11 : f32 to vector<2x1xf32>
    %17 = arith.mulf %16, %15 : vector<2x1xf32>
    %18 = math.tanh %17 : vector<2x1xf32>
    %cst_12 = arith.constant 1.000000e+00 : f32
    %19 = vector.broadcast %cst_12 : f32 to vector<2x1xf32>
    %20 = arith.addf %18, %19 : vector<2x1xf32>
    %cst_13 = arith.constant 5.000000e-01 : f32
    %21 = vector.broadcast %cst_13 : f32 to vector<2x1xf32>
    %22 = arith.mulf %21, %20 : vector<2x1xf32>
    %c0_14 = arith.constant 0 : index
    %c0_15 = arith.constant 0 : index
    %23 = vector.load %arg6[%c0_14, %c0_15] : memref<2x1xf32, #tpu.memory_space<vmem>>, vector<2x1xf32>
    tpu.vector_store %arg6[%c0_14, %c0_15], %22 {strides = array<i32>} : memref<2x1xf32, #tpu.memory_space<vmem>>, vector<2x1xf32>,
    return
  }
  func.func @transform_0(%arg0: i32) -> (i32, i32) {
    %c0_i32 = arith.constant 0 : i32
    %c0_i32_0 = arith.constant 0 : i32
    return %arg0, %c0_i32 : i32, i32
  }
  func.func @transform_1(%arg0: i32) -> (i32, i32) {
    %c0_i32 = arith.constant 0 : i32
    %c0_i32_0 = arith.constant 0 : i32
    %c0_i32_1 = arith.constant 0 : i32
    return %c0_i32, %c0_i32_0 : i32, i32
  }
  func.func @transform_2(%arg0: i32) -> (i32, i32) {
    %c0_i32 = arith.constant 0 : i32
    %c0_i32_0 = arith.constant 0 : i32
    %c0_i32_1 = arith.constant 0 : i32
    return %c0_i32, %c0_i32_0 : i32, i32
  }
  func.func @transform_3(%arg0: i32) -> (i32, i32) {
    %c0_i32 = arith.constant 0 : i32
    %c0_i32_0 = arith.constant 0 : i32
    %c0_i32_1 = arith.constant 0 : i32
    return %c0_i32, %c0_i32_0 : i32, i32
  }
  func.func @transform_4(%arg0: i32) -> (i32, i32) {
    %c0_i32 = arith.constant 0 : i32
    %c0_i32_0 = arith.constant 0 : i32
    %c0_i32_1 = arith.constant 0 : i32
    return %c0_i32, %c0_i32_0 : i32, i32
  }
  func.func @transform_5(%arg0: i32) -> (i32, i32) {
    %c0_i32 = arith.constant 0 : i32
    %c0_i32_0 = arith.constant 0 : i32
    return %arg0, %c0_i32 : i32, i32
  }
}

</mosaic_0001>

<llo_original>
// kernel: binary_classifier_forward.2
$region0: #{binary_classifier_forward.2}
  #allocation0 [shape = 'u32[]', space=smem, size = 0x4, offset = 0x4, fixed_abs, tag = 'smem constant byte address 0x4 - core index']
  #allocation1 [shape = 'u32[72,128]{1,0:T(1,128)}', space=vmem, size = 0x9000, scoped, tag = 'internal scratch']
  %s0 = inlined_call_operand.vmem [shape: f32[2,256,128], index: 0, kind: input, shape index: {}]
  %s1 = inlined_call_operand.vmem [shape: f32[128,32], index: 1, kind: input, shape index: {}]
  %s2 = inlined_call_operand.vmem [shape: f32[1,32], index: 2, kind: input, shape index: {}]
  %s3 = inlined_call_operand.vmem [shape: f32[2,64,32], index: 3, kind: output, shape index: {}]
  %s4 = sld [smem:[#allocation0]]
  $region45: #{binary_classifier_forward.2} parent=0
    _
  %s6 = ssub.s32 1, %s4
  %s7 = scalar_select 0, %s6, %s4
  loop: start=0, step=1, limit=4
  $region2: #{binary_classifier_forward.2} parent=0 // loop_pre_header
    _
  $region3: #{binary_classifier_forward.2} parent=0 // loop_header
    %s9 = sphi 0, %s13
    %p10 = scmp.ge.s32.totalorder %s9, 4
    %s19 = sphi 0, %s21
    %s22 = sphi 0, %s19
    %s23 = sphi 0, %s22
    %s39 = sphi 0, %s23
    %s43 = sphi 0, %s43
    %s45 = sphi 0, %s43
    %s46 = sphi 0, %s45
    %s60 = sphi 0, %s46
    %s64 = sphi 0, %s64
    %s66 = sphi 0, %s64
    %s67 = sphi 0, %s66
    %s81 = sphi 0, %s67
    %s87 = sphi 0, %s89
    %s90 = sphi 0, %s87
    %s91 = sphi 0, %s90
    %s107 = sphi 0, %s91
  $region4: #{binary_classifier_forward.2} parent=0 // loop_header_branch
    %12 = sbr.rel (%p10) target = $region8
  $region5: #{binary_classifier_forward.2} parent=0 // loop_body
    %s14 = ssub.s32 %s9, 1
    %s15 = ssub.s32 %s9, 2
    %s16 = sadd.s32 %s9, 1
    %s17 = ssub.s32 %s9, %s16
    %p18 = scmp.eq.s32.totalorder %s17, 0
    %s20 = sadd.s32 %s19, 1
    %s21 = scalar_select %p18, %s19, %s20
    %p24 = pneg %p18
    %p25 = scmp.eq.s32.totalorder %s9, 1
    %p26 = por %p24, %p25
    %p27 = scmp.ne.s32.totalorder %s19, %s22
    %p28 = scmp.eq.s32.totalorder %s9, 0
    %p29 = por %p27, %p28
    %p30 = scmp.ne.s32.totalorder %s19, %s22
    %p31 = scmp.eq.s32.totalorder %s14, 1
    %p32 = por %p30, %p31
    %p33 = scmp.ne.s32.totalorder %s22, %s23
    %p34 = scmp.eq.s32.totalorder %s14, 0
    %p35 = por %p33, %p34
    %p36 = scmp.ne.s32.totalorder %s22, %s23
    %p37 = scmp.eq.s32.totalorder %s15, 1
    %p38 = por %p36, %p37
    %p40 = scmp.ne.s32.totalorder %s23, %s39
    %p41 = scmp.eq.s32.totalorder %s15, 0
    %p42 = por %p40, %p41
    %s44 = sadd.s32 %s43, 1
    %p47 = scmp.eq.s32.totalorder %s9, 1
    %p48 = scmp.ne.s32.totalorder %s43, %s45
    %p49 = scmp.eq.s32.totalorder %s9, 0
    %p50 = por %p48, %p49
    %p51 = scmp.ne.s32.totalorder %s43, %s45
    %p52 = scmp.eq.s32.totalorder %s14, 1
    %p53 = por %p51, %p52
    %p54 = scmp.ne.s32.totalorder %s45, %s46
    %p55 = scmp.eq.s32.totalorder %s14, 0
    %p56 = por %p54, %p55
    %p57 = scmp.ne.s32.totalorder %s45, %s46
    %p58 = scmp.eq.s32.totalorder %s15, 1
    %p59 = por %p57, %p58
    %p61 = scmp.ne.s32.totalorder %s46, %s60
    %p62 = scmp.eq.s32.totalorder %s15, 0
    %p63 = por %p61, %p62
    %s65 = sadd.s32 %s64, 1
    %p68 = scmp.eq.s32.totalorder %s9, 1
    %p69 = scmp.ne.s32.totalorder %s64, %s66
    %p70 = scmp.eq.s32.totalorder %s9, 0
    %p71 = por %p69, %p70
    %p72 = scmp.ne.s32.totalorder %s64, %s66
    %p73 = scmp.eq.s32.totalorder %s14, 1
    %p74 = por %p72, %p73
    %p75 = scmp.ne.s32.totalorder %s66, %s67
    %p76 = scmp.eq.s32.totalorder %s14, 0
    %p77 = por %p75, %p76
    %p78 = scmp.ne.s32.totalorder %s66, %s67
    %p79 = scmp.eq.s32.totalorder %s15, 1
    %p80 = por %p78, %p79
    %p82 = scmp.ne.s32.totalorder %s67, %s81
    %p83 = scmp.eq.s32.totalorder %s15, 0
    %p84 = por %p82, %p83
    %s85 = ssub.s32 %s9, %s16
    %p86 = scmp.eq.s32.totalorder %s85, 0
    %s88 = sadd.s32 %s87, 1
    %s89 = scalar_select %p86, %s87, %s88
    %p92 = pneg %p86
    %p93 = scmp.eq.s32.totalorder %s9, 1
    %p94 = por %p92, %p93
    %p95 = scmp.ne.s32.totalorder %s87, %s90
    %p96 = scmp.eq.s32.totalorder %s9, 0
    %p97 = por %p95, %p96
    %p98 = scmp.ne.s32.totalorder %s87, %s90
    %p99 = scmp.eq.s32.totalorder %s14, 1
    %p100 = por %p98, %p99
    %p101 = scmp.ne.s32.totalorder %s90, %s91
    %p102 = scmp.eq.s32.totalorder %s14, 0
    %p103 = por %p101, %p102
    %p104 = scmp.ne.s32.totalorder %s90, %s91
    %p105 = scmp.eq.s32.totalorder %s15, 1
    %p106 = por %p104, %p105
    %p108 = scmp.ne.s32.totalorder %s91, %s107
    %p109 = scmp.eq.s32.totalorder %s15, 0
    %p110 = por %p108, %p109
    %p111 = scmp.le.s32.totalorder 1, %s9
    %p112 = scmp.lt.s32.totalorder %s9, 3
    %p113 = pnand %p111, %p112
    %p114 = pneg %p113
    // Predicated region
    $region9: #{binary_classifier_forward.2} parent=5 // pred_check
      _
    $region10: #{binary_classifier_forward.2} parent=5 // pred_check_branch
      %116 = sbr.rel (%p113) target = $region12
    $region11: #{binary_classifier_forward.2} parent=5 // pred_region
      %s117 = ssub.s32 %s9, 1
      // Predicated region
      $region13: #{binary_classifier_forward.2} parent=11 // pred_check
        %p118 = pneg %p56
      $region14: #{binary_classifier_forward.2} parent=11 // pred_check_branch
        %120 = sbr.rel (%p118) target = $region16
      $region15: #{binary_classifier_forward.2} parent=11 // pred_region
        _
      $region16: #{binary_classifier_forward.2} parent=11 // pred_fallthru
        _
      // Predicated region
      $region17: #{binary_classifier_forward.2} parent=11 // pred_check
        %p121 = pneg %p77
      $region18: #{binary_classifier_forward.2} parent=11 // pred_check_branch
        %123 = sbr.rel (%p121) target = $region20
      $region19: #{binary_classifier_forward.2} parent=11 // pred_region
        _
      $region20: #{binary_classifier_forward.2} parent=11 // pred_fallthru
        _
    $region12: #{binary_classifier_forward.2} parent=5 // pred_fallthru
      _
    %p124 = scmp.lt.s32.totalorder %s9, 2
    // Predicated region
    $region21: #{binary_classifier_forward.2} parent=5 // pred_check
      %p125 = pneg %p124
    $region22: #{binary_classifier_forward.2} parent=5 // pred_check_branch
      %127 = sbr.rel (%p125) target = $region24
    $region23: #{binary_classifier_forward.2} parent=5 // pred_region
      // Predicated region
      $region25: #{binary_classifier_forward.2} parent=23 // pred_check
        %p128 = pneg %p29
      $region26: #{binary_classifier_forward.2} parent=23 // pred_check_branch
        %130 = sbr.rel (%p128) target = $region28
      $region27: #{binary_classifier_forward.2} parent=23 // pred_region
        %p131 = scmp.lt.s32.totalorder %s9, 1
        %s132 = scalar_select %p131, %s9, 1
        %s133 = smul.addr %s132, 32
        %s134 = smul.addr %s133, 8
        %s135 = scalar_lea.vmem %s0, %s134
      $region28: #{binary_classifier_forward.2} parent=23 // pred_fallthru
        _
    $region24: #{binary_classifier_forward.2} parent=5 // pred_fallthru
      _
    %p136 = scmp.le.s32.totalorder 1, %s9
    %p137 = scmp.lt.s32.totalorder %s9, 3
    %p138 = pnand %p136, %p137
    %p139 = pneg %p138
    // Predicated region
    $region29: #{binary_classifier_forward.2} parent=5 // pred_check
      _
    $region30: #{binary_classifier_forward.2} parent=5 // pred_check_branch
      %141 = sbr.rel (%p138) target = $region32
    $region31: #{binary_classifier_forward.2} parent=5 // pred_region
      %s142 = ssub.s32 %s9, 1
      %p143 = scmp.lt.s32.totalorder %s14, 1
      %s144 = scalar_select %p143, %s14, 1
      %s145 = smul.addr %s144, 32
      %s146 = smul.addr %s145, 8
      %s147 = scalar_lea.vmem %s0, %s146
      %p148 = pneg %p35
      %p149 = pneg %p32
      %p150 = pneg %p56
      %p151 = pneg %p53
      %p152 = pneg %p77
      %p153 = pneg %p74
      %p154 = pneg %p103
      %p155 = pneg %p100
      %p156 = scmp.lt.s32.totalorder %s14, 1
      %s157 = scalar_select %p156, %s14, 1
      %s158 = smul.addr %s157, 8
      %s159 = smul.addr %s158, 8
      %s160 = scalar_lea.vmem %s3, %s159
      %p161 = scmp.lt.s32.totalorder %s14, 1
      %s162 = scalar_select %p161, %s14, 1
      %s163 = smul.addr %s162, 32
      %s164 = smul.addr %s163, 8
      %s165 = scalar_lea.vmem %s0, %s164
      %p166 = scmp.lt.s32.totalorder %s14, 1
      %s167 = scalar_select %p166, %s14, 1
      %s168 = smul.addr %s167, 8
      %s169 = smul.addr %s168, 8
      %s170 = scalar_lea.vmem %s3, %s169
      %v171 = vld [vmem:[%s165] sm:$0xff]
      %v172 = vld [vmem:[%s165 + $0x8] sm:$0xff]
      %v173 = vld [vmem:[%s165 + $0x10] sm:$0xff]
      %v174 = vld [vmem:[%s165 + $0x18] sm:$0xff]
      %v175 = vld [vmem:[%s165 + $0x20] sm:$0xff]
      %v176 = vld [vmem:[%s165 + $0x28] sm:$0xff]
      %v177 = vld [vmem:[%s165 + $0x30] sm:$0xff]
      %v178 = vld [vmem:[%s165 + $0x38] sm:$0xff]
      %v179 = vld [vmem:[%s165 + $0x40] sm:$0xff]
      %v180 = vld [vmem:[%s165 + $0x48] sm:$0xff]
      %v181 = vld [vmem:[%s165 + $0x50] sm:$0xff]
      %v182 = vld [vmem:[%s165 + $0x58] sm:$0xff]
      %v183 = vld [vmem:[%s165 + $0x60] sm:$0xff]
      %v184 = vld [vmem:[%s165 + $0x68] sm:$0xff]
      %v185 = vld [vmem:[%s165 + $0x70] sm:$0xff]
      %v186 = vld [vmem:[%s165 + $0x78] sm:$0xff]
      %v187 = vld [vmem:[%s165 + $0x80] sm:$0xff]
      %v188 = vld [vmem:[%s165 + $0x88] sm:$0xff]
      %v189 = vld [vmem:[%s165 + $0x90] sm:$0xff]
      %v190 = vld [vmem:[%s165 + $0x98] sm:$0xff]
      %v191 = vld [vmem:[%s165 + $0xa0] sm:$0xff]
      %v192 = vld [vmem:[%s165 + $0xa8] sm:$0xff]
      %v193 = vld [vmem:[%s165 + $0xb0] sm:$0xff]
      %v194 = vld [vmem:[%s165 + $0xb8] sm:$0xff]
      %v195 = vld [vmem:[%s165 + $0xc0] sm:$0xff]
      %v196 = vld [vmem:[%s165 + $0xc8] sm:$0xff]
      %v197 = vld [vmem:[%s165 + $0xd0] sm:$0xff]
      %v198 = vld [vmem:[%s165 + $0xd8] sm:$0xff]
      %v199 = vld [vmem:[%s165 + $0xe0] sm:$0xff]
      %v200 = vld [vmem:[%s165 + $0xe8] sm:$0xff]
      %v201 = vld [vmem:[%s165 + $0xf0] sm:$0xff]
      %v202 = vld [vmem:[%s165 + $0xf8] sm:$0xff]
      %v203 = vld [vmem:[%s1] sm:$0xff]
      %v204 = vld [vmem:[%s1 + $0x8] sm:$0xff]
      %v205 = vld [vmem:[%s1 + $0x10] sm:$0xff]
      %v206 = vld [vmem:[%s1 + $0x18] sm:$0xff]
      %v207 = vld [vmem:[%s1 + $0x20] sm:$0xff]
      %v208 = vld [vmem:[%s1 + $0x28] sm:$0xff]
      %v209 = vld [vmem:[%s1 + $0x30] sm:$0xff]
      %v210 = vld [vmem:[%s1 + $0x38] sm:$0xff]
      %v211 = vld [vmem:[%s1 + $0x40] sm:$0xff]
      %v212 = vld [vmem:[%s1 + $0x48] sm:$0xff]
      %v213 = vld [vmem:[%s1 + $0x50] sm:$0xff]
      %v214 = vld [vmem:[%s1 + $0x58] sm:$0xff]
      %v215 = vld [vmem:[%s1 + $0x60] sm:$0xff]
      %v216 = vld [vmem:[%s1 + $0x68] sm:$0xff]
      %v217 = vld [vmem:[%s1 + $0x70] sm:$0xff]
      %v218 = vld [vmem:[%s1 + $0x78] sm:$0xff]
      %v219 = vld [vmem:[%s2] sm:$0x1]
      %v221 = vperm.slane %v219, 0
      %223 = vmatpush.msra.mxu0 %v218
      %224 = vmatpush.msra.mxu0 %v217
      %225 = vmatpush.msra.mxu0 %v216
      %226 = vmatpush.msra.mxu0 %v215
      %227 = vmatpush.msra.mxu0 %v214
      %228 = vmatpush.msra.mxu0 %v213
      %229 = vmatpush.msra.mxu0 %v212
      %230 = vmatpush.msra.mxu0 %v211
      %231 = vmatpush.msra.mxu0 %v210
      %232 = vmatpush.msra.mxu0 %v209
      %233 = vmatpush.msra.mxu0 %v208
      %234 = vmatpush.msra.mxu0 %v207
      %235 = vmatpush.msra.mxu0 %v206
      %236 = vmatpush.msra.mxu0 %v205
      %237 = vmatpush.msra.mxu0 %v204
      %238 = vmatpush.msra.mxu0 %v203
      %239 = vmatmul.f32.gmra.mxu0 %v171
      %v240 = vpop.f32.mrf.mxu0
      %v241 = vadd.f32 %v221, %v240
      %242 = vmatmul.f32.gmra.mxu0 %v172
      %v243 = vpop.f32.mrf.mxu0
      %v244 = vadd.f32 %v221, %v243
      %245 = vmatmul.f32.gmra.mxu0 %v173
      %v246 = vpop.f32.mrf.mxu0
      %v247 = vadd.f32 %v221, %v246
      %248 = vmatmul.f32.gmra.mxu0 %v174
      %v249 = vpop.f32.mrf.mxu0
      %v250 = vadd.f32 %v221, %v249
      %251 = vmatmul.f32.gmra.mxu0 %v175
      %v252 = vpop.f32.mrf.mxu0
      %v253 = vadd.f32 %v221, %v252
      %254 = vmatmul.f32.gmra.mxu0 %v176
      %v255 = vpop.f32.mrf.mxu0
      %v256 = vadd.f32 %v221, %v255
      %257 = vmatmul.f32.gmra.mxu0 %v177
      %v258 = vpop.f32.mrf.mxu0
      %v259 = vadd.f32 %v221, %v258
      %260 = vmatmul.f32.gmra.mxu0 %v178
      %v261 = vpop.f32.mrf.mxu0
      %v262 = vadd.f32 %v221, %v261
      %263 = vmatmul.f32.gmra.mxu0 %v179
      %v264 = vpop.f32.mrf.mxu0
      %v265 = vadd.f32 %v221, %v264
      %266 = vmatmul.f32.gmra.mxu0 %v180
      %v267 = vpop.f32.mrf.mxu0
      %v268 = vadd.f32 %v221, %v267
      %269 = vmatmul.f32.gmra.mxu0 %v181
      %v270 = vpop.f32.mrf.mxu0
      %v271 = vadd.f32 %v221, %v270
      %272 = vmatmul.f32.gmra.mxu0 %v182
      %v273 = vpop.f32.mrf.mxu0
      %v274 = vadd.f32 %v221, %v273
      %275 = vmatmul.f32.gmra.mxu0 %v183
      %v276 = vpop.f32.mrf.mxu0
      %v277 = vadd.f32 %v221, %v276
      %278 = vmatmul.f32.gmra.mxu0 %v184
      %v279 = vpop.f32.mrf.mxu0
      %v280 = vadd.f32 %v221, %v279
      %281 = vmatmul.f32.gmra.mxu0 %v185
      %v282 = vpop.f32.mrf.mxu0
      %v283 = vadd.f32 %v221, %v282
      %284 = vmatmul.f32.gmra.mxu0 %v186
      %v285 = vpop.f32.mrf.mxu0
      %v286 = vadd.f32 %v221, %v285
      %287 = vmatmul.f32.gmra.mxu0 %v187
      %v288 = vpop.f32.mrf.mxu0
      %v289 = vadd.f32 %v221, %v288
      %290 = vmatmul.f32.gmra.mxu0 %v188
      %v291 = vpop.f32.mrf.mxu0
      %v292 = vadd.f32 %v221, %v291
      %293 = vmatmul.f32.gmra.mxu0 %v189
      %v294 = vpop.f32.mrf.mxu0
      %v295 = vadd.f32 %v221, %v294
      %296 = vmatmul.f32.gmra.mxu0 %v190
      %v297 = vpop.f32.mrf.mxu0
      %v298 = vadd.f32 %v221, %v297
      %299 = vmatmul.f32.gmra.mxu0 %v191
      %v300 = vpop.f32.mrf.mxu0
      %v301 = vadd.f32 %v221, %v300
      %302 = vmatmul.f32.gmra.mxu0 %v192
      %v303 = vpop.f32.mrf.mxu0
      %v304 = vadd.f32 %v221, %v303
      %305 = vmatmul.f32.gmra.mxu0 %v193
      %v306 = vpop.f32.mrf.mxu0
      %v307 = vadd.f32 %v221, %v306
      %308 = vmatmul.f32.gmra.mxu0 %v194
      %v309 = vpop.f32.mrf.mxu0
      %v310 = vadd.f32 %v221, %v309
      %311 = vmatmul.f32.gmra.mxu0 %v195
      %v312 = vpop.f32.mrf.mxu0
      %v313 = vadd.f32 %v221, %v312
      %314 = vmatmul.f32.gmra.mxu0 %v196
      %v315 = vpop.f32.mrf.mxu0
      %v316 = vadd.f32 %v221, %v315
      %317 = vmatmul.f32.gmra.mxu0 %v197
      %v318 = vpop.f32.mrf.mxu0
      %v319 = vadd.f32 %v221, %v318
      %320 = vmatmul.f32.gmra.mxu0 %v198
      %v321 = vpop.f32.mrf.mxu0
      %v322 = vadd.f32 %v221, %v321
      %323 = vmatmul.f32.gmra.mxu0 %v199
      %v324 = vpop.f32.mrf.mxu0
      %v325 = vadd.f32 %v221, %v324
      %326 = vmatmul.f32.gmra.mxu0 %v200
      %v327 = vpop.f32.mrf.mxu0
      %v328 = vadd.f32 %v221, %v327
      %329 = vmatmul.f32.gmra.mxu0 %v201
      %v330 = vpop.f32.mrf.mxu0
      %v331 = vadd.f32 %v221, %v330
      %332 = vmatmul.f32.gmra.mxu0 %v202
      %v333 = vpop.f32.mrf.mxu0
      %v334 = vadd.f32 %v221, %v333
      %335 = vdwg.mxu0
      %v336 = vmax.f32 %v241, 0.0
      %v337 = vmax.f32 %v244, 0.0
      %v338 = vmax.f32 %v247, 0.0
      %v339 = vmax.f32 %v250, 0.0
      %v340 = vmax.f32 %v253, 0.0
      %v341 = vmax.f32 %v256, 0.0
      %v342 = vmax.f32 %v259, 0.0
      %v343 = vmax.f32 %v262, 0.0
      %v344 = vmax.f32 %v265, 0.0
      %v345 = vmax.f32 %v268, 0.0
      %v346 = vmax.f32 %v271, 0.0
      %v347 = vmax.f32 %v274, 0.0
      %v348 = vmax.f32 %v277, 0.0
      %v349 = vmax.f32 %v280, 0.0
      %v350 = vmax.f32 %v283, 0.0
      %v351 = vmax.f32 %v286, 0.0
      %v352 = vmax.f32 %v289, 0.0
      %v353 = vmax.f32 %v292, 0.0
      %v354 = vmax.f32 %v295, 0.0
      %v355 = vmax.f32 %v298, 0.0
      %v356 = vmax.f32 %v301, 0.0
      %v357 = vmax.f32 %v304, 0.0
      %v358 = vmax.f32 %v307, 0.0
      %v359 = vmax.f32 %v310, 0.0
      %v360 = vmax.f32 %v313, 0.0
      %v361 = vmax.f32 %v316, 0.0
      %v362 = vmax.f32 %v319, 0.0
      %v363 = vmax.f32 %v322, 0.0
      %v364 = vmax.f32 %v325, 0.0
      %v365 = vmax.f32 %v328, 0.0
      %v366 = vmax.f32 %v331, 0.0
      %v367 = vmax.f32 %v334, 0.0
      %v368 = vmax.f32 %v336, %v344
      %v369 = vmax.f32 %v337, %v345
      %v370 = vmax.f32 %v338, %v346
      %v371 = vmax.f32 %v339, %v347
      %v372 = vmax.f32 %v340, %v348
      %v373 = vmax.f32 %v341, %v349
      %v374 = vmax.f32 %v342, %v350
      %v375 = vmax.f32 %v343, %v351
      %v376 = vmax.f32 %v352, %v360
      %v377 = vmax.f32 %v353, %v361
      %v378 = vmax.f32 %v354, %v362
      %v379 = vmax.f32 %v355, %v363
      %v380 = vmax.f32 %v356, %v364
      %v381 = vmax.f32 %v357, %v365
      %v382 = vmax.f32 %v358, %v366
      %v383 = vmax.f32 %v359, %v367
      %v384 = vmax.f32 %v368, %v376
      %v385 = vmax.f32 %v369, %v377
      %v386 = vmax.f32 %v370, %v378
      %v387 = vmax.f32 %v371, %v379
      %v388 = vmax.f32 %v372, %v380
      %v389 = vmax.f32 %v373, %v381
      %v390 = vmax.f32 %v374, %v382
      %v391 = vmax.f32 %v375, %v383
      %vm392 = vcmask 261120
      %393 = vst.msk [vmem:[%s170] sm:$0xff] %vm392, %v384
      %394 = vst.msk [vmem:[%s170 + $0x8] sm:$0xff] %vm392, %v385
      %395 = vst.msk [vmem:[%s170 + $0x10] sm:$0xff] %vm392, %v386
      %396 = vst.msk [vmem:[%s170 + $0x18] sm:$0xff] %vm392, %v387
      %397 = vst.msk [vmem:[%s170 + $0x20] sm:$0xff] %vm392, %v388
      %398 = vst.msk [vmem:[%s170 + $0x28] sm:$0xff] %vm392, %v389
      %399 = vst.msk [vmem:[%s170 + $0x30] sm:$0xff] %vm392, %v390
      %400 = vst.msk [vmem:[%s170 + $0x38] sm:$0xff] %vm392, %v391
      %p401 = scmp.lt.s32.totalorder %s14, 1
      %s402 = scalar_select %p401, %s14, 1
      %s403 = smul.addr %s402, 8
      %s404 = smul.addr %s403, 8
      %s405 = scalar_lea.vmem %s3, %s404
      // Predicated region
      $region33: #{binary_classifier_forward.2} parent=31 // pred_check
        %p406 = pneg %p100
      $region34: #{binary_classifier_forward.2} parent=31 // pred_check_branch
        %408 = sbr.rel (%p406) target = $region36
      $region35: #{binary_classifier_forward.2} parent=31 // pred_region
        _
      $region36: #{binary_classifier_forward.2} parent=31 // pred_fallthru
        _
    $region32: #{binary_classifier_forward.2} parent=5 // pred_fallthru
      _
    %p409 = scmp.le.s32.totalorder 2, %s9
    // Predicated region
    $region37: #{binary_classifier_forward.2} parent=5 // pred_check
      %p410 = pneg %p409
    $region38: #{binary_classifier_forward.2} parent=5 // pred_check_branch
      %412 = sbr.rel (%p410) target = $region40
    $region39: #{binary_classifier_forward.2} parent=5 // pred_region
      %s413 = ssub.s32 %s9, 2
      // Predicated region
      $region41: #{binary_classifier_forward.2} parent=39 // pred_check
        %p414 = pneg %p106
      $region42: #{binary_classifier_forward.2} parent=39 // pred_check_branch
        %416 = sbr.rel (%p414) target = $region44
      $region43: #{binary_classifier_forward.2} parent=39 // pred_region
        %p417 = scmp.lt.s32.totalorder %s15, 1
        %s418 = scalar_select %p417, %s15, 1
        %s419 = smul.addr %s418, 8
        %s420 = smul.addr %s419, 8
        %s421 = scalar_lea.vmem %s3, %s420
      $region44: #{binary_classifier_forward.2} parent=39 // pred_fallthru
        _
    $region40: #{binary_classifier_forward.2} parent=5 // pred_fallthru
      _
  $region6: #{binary_classifier_forward.2} parent=0 // loop_footer
    %s13 = sadd.s32 1, %s9
  $region7: #{binary_classifier_forward.2} parent=0 // loop_footer_branch
    %8 = sbr.rel target = $region3
  $region8: #{binary_classifier_forward.2} parent=0 // loop_exit
    _

// kernel: binary_classifier_forward.3
$region0: #{binary_classifier_forward.3}
  #allocation0 [shape = 'u32[]', space=smem, size = 0x4, offset = 0x4, fixed_abs, tag = 'smem constant byte address 0x4 - core index']
  #allocation1 [shape = 'u32[72,128]{1,0:T(1,128)}', space=vmem, size = 0x9000, scoped, tag = 'internal scratch']
  #allocation2 [shape = 'f32[1,1]{1,0:T(1,128)S(1)}', space=vmem, size = 0x200, scoped, tag = 'scoped memory for binary_classifier_forward.3']
  %s0 = inlined_call_operand.vmem [shape: f32[2,2048], index: 0, kind: input, shape index: {}]
  %s1 = inlined_call_operand.vmem [shape: f32[2048,64], index: 1, kind: input, shape index: {}]
  %s2 = inlined_call_operand.vmem [shape: f32[1,64], index: 2, kind: input, shape index: {}]
  %s3 = inlined_call_operand.vmem [shape: f32[1,64], index: 3, kind: input, shape index: {}]
  %s4 = inlined_call_operand.<no memory space> [shape: f32[1,1], index: 4, kind: input, shape index: {}]
  %s5 = inlined_call_operand.vmem [shape: f32[2,1], index: 5, kind: output, shape index: {}]
  %s6 = sld [smem:[#allocation0]]
  $region30: #{binary_classifier_forward.3} parent=0
    _
  %s8 = ssub.s32 1, %s6
  %s9 = scalar_select 0, %s8, %s6
  %v10 = vstv %s4
  %11 = vst [vmem:[#allocation2] sm:$0x1] %v10
  // Predicated region
  $region2: #{binary_classifier_forward.3} parent=0 // pred_check
    _
  $region3: #{binary_classifier_forward.3} parent=0 // pred_check_branch
    %13 = sbr.rel (0) target = $region5
  $region4: #{binary_classifier_forward.3} parent=0 // pred_region
    _
  $region5: #{binary_classifier_forward.3} parent=0 // pred_fallthru
    _
  // Predicated region
  $region6: #{binary_classifier_forward.3} parent=0 // pred_check
    _
  $region7: #{binary_classifier_forward.3} parent=0 // pred_check_branch
    %15 = sbr.rel (0) target = $region9
  $region8: #{binary_classifier_forward.3} parent=0 // pred_region
    _
  $region9: #{binary_classifier_forward.3} parent=0 // pred_fallthru
    _
  // Predicated region
  $region10: #{binary_classifier_forward.3} parent=0 // pred_check
    _
  $region11: #{binary_classifier_forward.3} parent=0 // pred_check_branch
    %17 = sbr.rel (0) target = $region13
  $region12: #{binary_classifier_forward.3} parent=0 // pred_region
    _
  $region13: #{binary_classifier_forward.3} parent=0 // pred_fallthru
    _
  // Predicated region
  $region14: #{binary_classifier_forward.3} parent=0 // pred_check
    _
  $region15: #{binary_classifier_forward.3} parent=0 // pred_check_branch
    %19 = sbr.rel (0) target = $region17
  $region16: #{binary_classifier_forward.3} parent=0 // pred_region
    _
  $region17: #{binary_classifier_forward.3} parent=0 // pred_fallthru
    _
  // Predicated region
  $region18: #{binary_classifier_forward.3} parent=0 // pred_check
    _
  $region19: #{binary_classifier_forward.3} parent=0 // pred_check_branch
    %21 = sbr.rel (0) target = $region21
  $region20: #{binary_classifier_forward.3} parent=0 // pred_region
    _
  $region21: #{binary_classifier_forward.3} parent=0 // pred_fallthru
    _
  %v22 = vld [vmem:[%s0] sm:$0xff]
  %v23 = vld [vmem:[%s0 + $0x8] sm:$0xff]
  %v24 = vld [vmem:[%s0 + $0x10] sm:$0xff]
  %v25 = vld [vmem:[%s0 + $0x18] sm:$0xff]
  %v26 = vld [vmem:[%s1] sm:$0xff]
  %v27 = vld [vmem:[%s1 + $0x8] sm:$0xff]
  %v28 = vld [vmem:[%s1 + $0x10] sm:$0xff]
  %v29 = vld [vmem:[%s1 + $0x18] sm:$0xff]
  %v30 = vld [vmem:[%s1 + $0x20] sm:$0xff]
  %v31 = vld [vmem:[%s1 + $0x28] sm:$0xff]
  %v32 = vld [vmem:[%s1 + $0x30] sm:$0xff]
  %v33 = vld [vmem:[%s1 + $0x38] sm:$0xff]
  %v34 = vld [vmem:[%s1 + $0x40] sm:$0xff]
  %v35 = vld [vmem:[%s1 + $0x48] sm:$0xff]
  %v36 = vld [vmem:[%s1 + $0x50] sm:$0xff]
  %v37 = vld [vmem:[%s1 + $0x58] sm:$0xff]
  %v38 = vld [vmem:[%s1 + $0x60] sm:$0xff]
  %v39 = vld [vmem:[%s1 + $0x68] sm:$0xff]
  %v40 = vld [vmem:[%s1 + $0x70] sm:$0xff]
  %v41 = vld [vmem:[%s1 + $0x78] sm:$0xff]
  %v42 = vld [vmem:[%s1 + $0x80] sm:$0xff]
  %v43 = vld [vmem:[%s1 + $0x88] sm:$0xff]
  %v44 = vld [vmem:[%s1 + $0x90] sm:$0xff]
  %v45 = vld [vmem:[%s1 + $0x98] sm:$0xff]
  %v46 = vld [vmem:[%s1 + $0xa0] sm:$0xff]
  %v47 = vld [vmem:[%s1 + $0xa8] sm:$0xff]
  %v48 = vld [vmem:[%s1 + $0xb0] sm:$0xff]
  %v49 = vld [vmem:[%s1 + $0xb8] sm:$0xff]
  %v50 = vld [vmem:[%s1 + $0xc0] sm:$0xff]
  %v51 = vld [vmem:[%s1 + $0xc8] sm:$0xff]
  %v52 = vld [vmem:[%s1 + $0xd0] sm:$0xff]
  %v53 = vld [vmem:[%s1 + $0xd8] sm:$0xff]
  %v54 = vld [vmem:[%s1 + $0xe0] sm:$0xff]
  %v55 = vld [vmem:[%s1 + $0xe8] sm:$0xff]
  %v56 = vld [vmem:[%s1 + $0xf0] sm:$0xff]
  %v57 = vld [vmem:[%s1 + $0xf8] sm:$0xff]
  %v58 = vld [vmem:[%s1 + $0x100] sm:$0xff]
  %v59 = vld [vmem:[%s1 + $0x108] sm:$0xff]
  %v60 = vld [vmem:[%s1 + $0x110] sm:$0xff]
  %v61 = vld [vmem:[%s1 + $0x118] sm:$0xff]
  %v62 = vld [vmem:[%s1 + $0x120] sm:$0xff]
  %v63 = vld [vmem:[%s1 + $0x128] sm:$0xff]
  %v64 = vld [vmem:[%s1 + $0x130] sm:$0xff]
  %v65 = vld [vmem:[%s1 + $0x138] sm:$0xff]
  %v66 = vld [vmem:[%s1 + $0x140] sm:$0xff]
  %v67 = vld [vmem:[%s1 + $0x148] sm:$0xff]
  %v68 = vld [vmem:[%s1 + $0x150] sm:$0xff]
  %v69 = vld [vmem:[%s1 + $0x158] sm:$0xff]
  %v70 = vld [vmem:[%s1 + $0x160] sm:$0xff]
  %v71 = vld [vmem:[%s1 + $0x168] sm:$0xff]
  %v72 = vld [vmem:[%s1 + $0x170] sm:$0xff]
  %v73 = vld [vmem:[%s1 + $0x178] sm:$0xff]
  %v74 = vld [vmem:[%s1 + $0x180] sm:$0xff]
  %v75 = vld [vmem:[%s1 + $0x188] sm:$0xff]
  %v76 = vld [vmem:[%s1 + $0x190] sm:$0xff]
  %v77 = vld [vmem:[%s1 + $0x198] sm:$0xff]
  %v78 = vld [vmem:[%s1 + $0x1a0] sm:$0xff]
  %v79 = vld [vmem:[%s1 + $0x1a8] sm:$0xff]
  %v80 = vld [vmem:[%s1 + $0x1b0] sm:$0xff]
  %v81 = vld [vmem:[%s1 + $0x1b8] sm:$0xff]
  %v82 = vld [vmem:[%s1 + $0x1c0] sm:$0xff]
  %v83 = vld [vmem:[%s1 + $0x1c8] sm:$0xff]
  %v84 = vld [vmem:[%s1 + $0x1d0] sm:$0xff]
  %v85 = vld [vmem:[%s1 + $0x1d8] sm:$0xff]
  %v86 = vld [vmem:[%s1 + $0x1e0] sm:$0xff]
  %v87 = vld [vmem:[%s1 + $0x1e8] sm:$0xff]
  %v88 = vld [vmem:[%s1 + $0x1f0] sm:$0xff]
  %v89 = vld [vmem:[%s1 + $0x1f8] sm:$0xff]
  %v90 = vld [vmem:[%s1 + $0x200] sm:$0xff]
  %v91 = vld [vmem:[%s1 + $0x208] sm:$0xff]
  %v92 = vld [vmem:[%s1 + $0x210] sm:$0xff]
  %v93 = vld [vmem:[%s1 + $0x218] sm:$0xff]
  %v94 = vld [vmem:[%s1 + $0x220] sm:$0xff]
  %v95 = vld [vmem:[%s1 + $0x228] sm:$0xff]
  %v96 = vld [vmem:[%s1 + $0x230] sm:$0xff]
  %v97 = vld [vmem:[%s1 + $0x238] sm:$0xff]
  %v98 = vld [vmem:[%s1 + $0x240] sm:$0xff]
  %v99 = vld [vmem:[%s1 + $0x248] sm:$0xff]
  %v100 = vld [vmem:[%s1 + $0x250] sm:$0xff]
  %v101 = vld [vmem:[%s1 + $0x258] sm:$0xff]
  %v102 = vld [vmem:[%s1 + $0x260] sm:$0xff]
  %v103 = vld [vmem:[%s1 + $0x268] sm:$0xff]
  %v104 = vld [vmem:[%s1 + $0x270] sm:$0xff]
  %v105 = vld [vmem:[%s1 + $0x278] sm:$0xff]
  %v106 = vld [vmem:[%s1 + $0x280] sm:$0xff]
  %v107 = vld [vmem:[%s1 + $0x288] sm:$0xff]
  %v108 = vld [vmem:[%s1 + $0x290] sm:$0xff]
  %v109 = vld [vmem:[%s1 + $0x298] sm:$0xff]
  %v110 = vld [vmem:[%s1 + $0x2a0] sm:$0xff]
  %v111 = vld [vmem:[%s1 + $0x2a8] sm:$0xff]
  %v112 = vld [vmem:[%s1 + $0x2b0] sm:$0xff]
  %v113 = vld [vmem:[%s1 + $0x2b8] sm:$0xff]
  %v114 = vld [vmem:[%s1 + $0x2c0] sm:$0xff]
  %v115 = vld [vmem:[%s1 + $0x2c8] sm:$0xff]
  %v116 = vld [vmem:[%s1 + $0x2d0] sm:$0xff]
  %v117 = vld [vmem:[%s1 + $0x2d8] sm:$0xff]
  %v118 = vld [vmem:[%s1 + $0x2e0] sm:$0xff]
  %v119 = vld [vmem:[%s1 + $0x2e8] sm:$0xff]
  %v120 = vld [vmem:[%s1 + $0x2f0] sm:$0xff]
  %v121 = vld [vmem:[%s1 + $0x2f8] sm:$0xff]
  %v122 = vld [vmem:[%s1 + $0x300] sm:$0xff]
  %v123 = vld [vmem:[%s1 + $0x308] sm:$0xff]
  %v124 = vld [vmem:[%s1 + $0x310] sm:$0xff]
  %v125 = vld [vmem:[%s1 + $0x318] sm:$0xff]
  %v126 = vld [vmem:[%s1 + $0x320] sm:$0xff]
  %v127 = vld [vmem:[%s1 + $0x328] sm:$0xff]
  %v128 = vld [vmem:[%s1 + $0x330] sm:$0xff]
  %v129 = vld [vmem:[%s1 + $0x338] sm:$0xff]
  %v130 = vld [vmem:[%s1 + $0x340] sm:$0xff]
  %v131 = vld [vmem:[%s1 + $0x348] sm:$0xff]
  %v132 = vld [vmem:[%s1 + $0x350] sm:$0xff]
  %v133 = vld [vmem:[%s1 + $0x358] sm:$0xff]
  %v134 = vld [vmem:[%s1 + $0x360] sm:$0xff]
  %v135 = vld [vmem:[%s1 + $0x368] sm:$0xff]
  %v136 = vld [vmem:[%s1 + $0x370] sm:$0xff]
  %v137 = vld [vmem:[%s1 + $0x378] sm:$0xff]
  %v138 = vld [vmem:[%s1 + $0x380] sm:$0xff]
  %v139 = vld [vmem:[%s1 + $0x388] sm:$0xff]
  %v140 = vld [vmem:[%s1 + $0x390] sm:$0xff]
  %v141 = vld [vmem:[%s1 + $0x398] sm:$0xff]
  %v142 = vld [vmem:[%s1 + $0x3a0] sm:$0xff]
  %v143 = vld [vmem:[%s1 + $0x3a8] sm:$0xff]
  %v144 = vld [vmem:[%s1 + $0x3b0] sm:$0xff]
  %v145 = vld [vmem:[%s1 + $0x3b8] sm:$0xff]
  %v146 = vld [vmem:[%s1 + $0x3c0] sm:$0xff]
  %v147 = vld [vmem:[%s1 + $0x3c8] sm:$0xff]
  %v148 = vld [vmem:[%s1 + $0x3d0] sm:$0xff]
  %v149 = vld [vmem:[%s1 + $0x3d8] sm:$0xff]
  %v150 = vld [vmem:[%s1 + $0x3e0] sm:$0xff]
  %v151 = vld [vmem:[%s1 + $0x3e8] sm:$0xff]
  %v152 = vld [vmem:[%s1 + $0x3f0] sm:$0xff]
  %v153 = vld [vmem:[%s1 + $0x3f8] sm:$0xff]
  %v154 = vld [vmem:[%s1 + $0x400] sm:$0xff]
  %v155 = vld [vmem:[%s1 + $0x408] sm:$0xff]
  %v156 = vld [vmem:[%s1 + $0x410] sm:$0xff]
  %v157 = vld [vmem:[%s1 + $0x418] sm:$0xff]
  %v158 = vld [vmem:[%s1 + $0x420] sm:$0xff]
  %v159 = vld [vmem:[%s1 + $0x428] sm:$0xff]
  %v160 = vld [vmem:[%s1 + $0x430] sm:$0xff]
  %v161 = vld [vmem:[%s1 + $0x438] sm:$0xff]
  %v162 = vld [vmem:[%s1 + $0x440] sm:$0xff]
  %v163 = vld [vmem:[%s1 + $0x448] sm:$0xff]
  %v164 = vld [vmem:[%s1 + $0x450] sm:$0xff]
  %v165 = vld [vmem:[%s1 + $0x458] sm:$0xff]
  %v166 = vld [vmem:[%s1 + $0x460] sm:$0xff]
  %v167 = vld [vmem:[%s1 + $0x468] sm:$0xff]
  %v168 = vld [vmem:[%s1 + $0x470] sm:$0xff]
  %v169 = vld [vmem:[%s1 + $0x478] sm:$0xff]
  %v170 = vld [vmem:[%s1 + $0x480] sm:$0xff]
  %v171 = vld [vmem:[%s1 + $0x488] sm:$0xff]
  %v172 = vld [vmem:[%s1 + $0x490] sm:$0xff]
  %v173 = vld [vmem:[%s1 + $0x498] sm:$0xff]
  %v174 = vld [vmem:[%s1 + $0x4a0] sm:$0xff]
  %v175 = vld [vmem:[%s1 + $0x4a8] sm:$0xff]
  %v176 = vld [vmem:[%s1 + $0x4b0] sm:$0xff]
  %v177 = vld [vmem:[%s1 + $0x4b8] sm:$0xff]
  %v178 = vld [vmem:[%s1 + $0x4c0] sm:$0xff]
  %v179 = vld [vmem:[%s1 + $0x4c8] sm:$0xff]
  %v180 = vld [vmem:[%s1 + $0x4d0] sm:$0xff]
  %v181 = vld [vmem:[%s1 + $0x4d8] sm:$0xff]
  %v182 = vld [vmem:[%s1 + $0x4e0] sm:$0xff]
  %v183 = vld [vmem:[%s1 + $0x4e8] sm:$0xff]
  %v184 = vld [vmem:[%s1 + $0x4f0] sm:$0xff]
  %v185 = vld [vmem:[%s1 + $0x4f8] sm:$0xff]
  %v186 = vld [vmem:[%s1 + $0x500] sm:$0xff]
  %v187 = vld [vmem:[%s1 + $0x508] sm:$0xff]
  %v188 = vld [vmem:[%s1 + $0x510] sm:$0xff]
  %v189 = vld [vmem:[%s1 + $0x518] sm:$0xff]
  %v190 = vld [vmem:[%s1 + $0x520] sm:$0xff]
  %v191 = vld [vmem:[%s1 + $0x528] sm:$0xff]
  %v192 = vld [vmem:[%s1 + $0x530] sm:$0xff]
  %v193 = vld [vmem:[%s1 + $0x538] sm:$0xff]
  %v194 = vld [vmem:[%s1 + $0x540] sm:$0xff]
  %v195 = vld [vmem:[%s1 + $0x548] sm:$0xff]
  %v196 = vld [vmem:[%s1 + $0x550] sm:$0xff]
  %v197 = vld [vmem:[%s1 + $0x558] sm:$0xff]
  %v198 = vld [vmem:[%s1 + $0x560] sm:$0xff]
  %v199 = vld [vmem:[%s1 + $0x568] sm:$0xff]
  %v200 = vld [vmem:[%s1 + $0x570] sm:$0xff]
  %v201 = vld [vmem:[%s1 + $0x578] sm:$0xff]
  %v202 = vld [vmem:[%s1 + $0x580] sm:$0xff]
  %v203 = vld [vmem:[%s1 + $0x588] sm:$0xff]
  %v204 = vld [vmem:[%s1 + $0x590] sm:$0xff]
  %v205 = vld [vmem:[%s1 + $0x598] sm:$0xff]
  %v206 = vld [vmem:[%s1 + $0x5a0] sm:$0xff]
  %v207 = vld [vmem:[%s1 + $0x5a8] sm:$0xff]
  %v208 = vld [vmem:[%s1 + $0x5b0] sm:$0xff]
  %v209 = vld [vmem:[%s1 + $0x5b8] sm:$0xff]
  %v210 = vld [vmem:[%s1 + $0x5c0] sm:$0xff]
  %v211 = vld [vmem:[%s1 + $0x5c8] sm:$0xff]
  %v212 = vld [vmem:[%s1 + $0x5d0] sm:$0xff]
  %v213 = vld [vmem:[%s1 + $0x5d8] sm:$0xff]
  %v214 = vld [vmem:[%s1 + $0x5e0] sm:$0xff]
  %v215 = vld [vmem:[%s1 + $0x5e8] sm:$0xff]
  %v216 = vld [vmem:[%s1 + $0x5f0] sm:$0xff]
  %v217 = vld [vmem:[%s1 + $0x5f8] sm:$0xff]
  %v218 = vld [vmem:[%s1 + $0x600] sm:$0xff]
  %v219 = vld [vmem:[%s1 + $0x608] sm:$0xff]
  %v220 = vld [vmem:[%s1 + $0x610] sm:$0xff]
  %v221 = vld [vmem:[%s1 + $0x618] sm:$0xff]
  %v222 = vld [vmem:[%s1 + $0x620] sm:$0xff]
  %v223 = vld [vmem:[%s1 + $0x628] sm:$0xff]
  %v224 = vld [vmem:[%s1 + $0x630] sm:$0xff]
  %v225 = vld [vmem:[%s1 + $0x638] sm:$0xff]
  %v226 = vld [vmem:[%s1 + $0x640] sm:$0xff]
  %v227 = vld [vmem:[%s1 + $0x648] sm:$0xff]
  %v228 = vld [vmem:[%s1 + $0x650] sm:$0xff]
  %v229 = vld [vmem:[%s1 + $0x658] sm:$0xff]
  %v230 = vld [vmem:[%s1 + $0x660] sm:$0xff]
  %v231 = vld [vmem:[%s1 + $0x668] sm:$0xff]
  %v232 = vld [vmem:[%s1 + $0x670] sm:$0xff]
  %v233 = vld [vmem:[%s1 + $0x678] sm:$0xff]
  %v234 = vld [vmem:[%s1 + $0x680] sm:$0xff]
  %v235 = vld [vmem:[%s1 + $0x688] sm:$0xff]
  %v236 = vld [vmem:[%s1 + $0x690] sm:$0xff]
  %v237 = vld [vmem:[%s1 + $0x698] sm:$0xff]
  %v238 = vld [vmem:[%s1 + $0x6a0] sm:$0xff]
  %v239 = vld [vmem:[%s1 + $0x6a8] sm:$0xff]
  %v240 = vld [vmem:[%s1 + $0x6b0] sm:$0xff]
  %v241 = vld [vmem:[%s1 + $0x6b8] sm:$0xff]
  %v242 = vld [vmem:[%s1 + $0x6c0] sm:$0xff]
  %v243 = vld [vmem:[%s1 + $0x6c8] sm:$0xff]
  %v244 = vld [vmem:[%s1 + $0x6d0] sm:$0xff]
  %v245 = vld [vmem:[%s1 + $0x6d8] sm:$0xff]
  %v246 = vld [vmem:[%s1 + $0x6e0] sm:$0xff]
  %v247 = vld [vmem:[%s1 + $0x6e8] sm:$0xff]
  %v248 = vld [vmem:[%s1 + $0x6f0] sm:$0xff]
  %v249 = vld [vmem:[%s1 + $0x6f8] sm:$0xff]
  %v250 = vld [vmem:[%s1 + $0x700] sm:$0xff]
  %v251 = vld [vmem:[%s1 + $0x708] sm:$0xff]
  %v252 = vld [vmem:[%s1 + $0x710] sm:$0xff]
  %v253 = vld [vmem:[%s1 + $0x718] sm:$0xff]
  %v254 = vld [vmem:[%s1 + $0x720] sm:$0xff]
  %v255 = vld [vmem:[%s1 + $0x728] sm:$0xff]
  %v256 = vld [vmem:[%s1 + $0x730] sm:$0xff]
  %v257 = vld [vmem:[%s1 + $0x738] sm:$0xff]
  %v258 = vld [vmem:[%s1 + $0x740] sm:$0xff]
  %v259 = vld [vmem:[%s1 + $0x748] sm:$0xff]
  %v260 = vld [vmem:[%s1 + $0x750] sm:$0xff]
  %v261 = vld [vmem:[%s1 + $0x758] sm:$0xff]
  %v262 = vld [vmem:[%s1 + $0x760] sm:$0xff]
  %v263 = vld [vmem:[%s1 + $0x768] sm:$0xff]
  %v264 = vld [vmem:[%s1 + $0x770] sm:$0xff]
  %v265 = vld [vmem:[%s1 + $0x778] sm:$0xff]
  %v266 = vld [vmem:[%s1 + $0x780] sm:$0xff]
  %v267 = vld [vmem:[%s1 + $0x788] sm:$0xff]
  %v268 = vld [vmem:[%s1 + $0x790] sm:$0xff]
  %v269 = vld [vmem:[%s1 + $0x798] sm:$0xff]
  %v270 = vld [vmem:[%s1 + $0x7a0] sm:$0xff]
  %v271 = vld [vmem:[%s1 + $0x7a8] sm:$0xff]
  %v272 = vld [vmem:[%s1 + $0x7b0] sm:$0xff]
  %v273 = vld [vmem:[%s1 + $0x7b8] sm:$0xff]
  %v274 = vld [vmem:[%s1 + $0x7c0] sm:$0xff]
  %v275 = vld [vmem:[%s1 + $0x7c8] sm:$0xff]
  %v276 = vld [vmem:[%s1 + $0x7d0] sm:$0xff]
  %v277 = vld [vmem:[%s1 + $0x7d8] sm:$0xff]
  %v278 = vld [vmem:[%s1 + $0x7e0] sm:$0xff]
  %v279 = vld [vmem:[%s1 + $0x7e8] sm:$0xff]
  %v280 = vld [vmem:[%s1 + $0x7f0] sm:$0xff]
  %v281 = vld [vmem:[%s1 + $0x7f8] sm:$0xff]
  %v282 = vld [vmem:[%s2] sm:$0x1]
  %v284 = vperm.slane %v282, 0
  %290 = vst [vmem:[#allocation1] ss:$4 sm:$0xff] %v22
  %s291 = scalar_lea.vmem [#allocation1], 32
  %292 = vst [vmem:[%s291] ss:$4 sm:$0xff] %v23
  %v293 = vld.sshfl [vmem:[#allocation1] sm:$0xff pattern:$0x73625140]
  %v294 = vld.sshfl [vmem:[#allocation1 + $0x8] sm:$0xff pattern:$0x73625140]
  %v295 = vld.sshfl [vmem:[#allocation1 + $0x10] sm:$0xff pattern:$0x73625140]
  %v296 = vld.sshfl [vmem:[#allocation1 + $0x18] sm:$0xff pattern:$0x73625140]
  %v297 = vld.sshfl [vmem:[#allocation1 + $0x20] sm:$0xff pattern:$0x73625140]
  %v298 = vld.sshfl [vmem:[#allocation1 + $0x28] sm:$0xff pattern:$0x73625140]
  %v299 = vld.sshfl [vmem:[#allocation1 + $0x30] sm:$0xff pattern:$0x73625140]
  %v300 = vld.sshfl [vmem:[#allocation1 + $0x38] sm:$0xff pattern:$0x73625140]
  %301 = vst [vmem:[#allocation1] ss:$4 sm:$0xff] %v24
  %302 = vst [vmem:[%s291] ss:$4 sm:$0xff] %v25
  %v303 = vld.sshfl [vmem:[#allocation1] sm:$0xff pattern:$0x73625140]
  %v304 = vld.sshfl [vmem:[#allocation1 + $0x8] sm:$0xff pattern:$0x73625140]
  %v305 = vld.sshfl [vmem:[#allocation1 + $0x10] sm:$0xff pattern:$0x73625140]
  %v306 = vld.sshfl [vmem:[#allocation1 + $0x18] sm:$0xff pattern:$0x73625140]
  %v307 = vld.sshfl [vmem:[#allocation1 + $0x20] sm:$0xff pattern:$0x73625140]
  %v308 = vld.sshfl [vmem:[#allocation1 + $0x28] sm:$0xff pattern:$0x73625140]
  %v309 = vld.sshfl [vmem:[#allocation1 + $0x30] sm:$0xff pattern:$0x73625140]
  %v310 = vld.sshfl [vmem:[#allocation1 + $0x38] sm:$0xff pattern:$0x73625140]
  %327 = vmatpush.msra.mxu0 %v41
  %328 = vmatpush.msra.mxu0 %v40
  %329 = vmatpush.msra.mxu0 %v39
  %330 = vmatpush.msra.mxu0 %v38
  %331 = vmatpush.msra.mxu0 %v37
  %332 = vmatpush.msra.mxu0 %v36
  %333 = vmatpush.msra.mxu0 %v35
  %334 = vmatpush.msra.mxu0 %v34
  %335 = vmatpush.msra.mxu0 %v33
  %336 = vmatpush.msra.mxu0 %v32
  %337 = vmatpush.msra.mxu0 %v31
  %338 = vmatpush.msra.mxu0 %v30
  %339 = vmatpush.msra.mxu0 %v29
  %340 = vmatpush.msra.mxu0 %v28
  %341 = vmatpush.msra.mxu0 %v27
  %342 = vmatpush.msra.mxu0 %v26
  %343 = vmatmul.f32.gmra.mxu0 %v293
  %v344 = vpop.f32.mrf.mxu0
  %v345 = vadd.f32 %v284, %v344
  %346 = vdwg.mxu0
  %347 = vmatpush.msra.mxu0 %v57
  %348 = vmatpush.msra.mxu0 %v56
  %349 = vmatpush.msra.mxu0 %v55
  %350 = vmatpush.msra.mxu0 %v54
  %351 = vmatpush.msra.mxu0 %v53
  %352 = vmatpush.msra.mxu0 %v52
  %353 = vmatpush.msra.mxu0 %v51
  %354 = vmatpush.msra.mxu0 %v50
  %355 = vmatpush.msra.mxu0 %v49
  %356 = vmatpush.msra.mxu0 %v48
  %357 = vmatpush.msra.mxu0 %v47
  %358 = vmatpush.msra.mxu0 %v46
  %359 = vmatpush.msra.mxu0 %v45
  %360 = vmatpush.msra.mxu0 %v44
  %361 = vmatpush.msra.mxu0 %v43
  %362 = vmatpush.msra.mxu0 %v42
  %363 = vmatmul.f32.gmra.mxu0 %v294
  %v364 = vpop.f32.mrf.mxu0
  %v365 = vadd.f32 %v345, %v364
  %366 = vdwg.mxu0
  %367 = vmatpush.msra.mxu0 %v73
  %368 = vmatpush.msra.mxu0 %v72
  %369 = vmatpush.msra.mxu0 %v71
  %370 = vmatpush.msra.mxu0 %v70
  %371 = vmatpush.msra.mxu0 %v69
  %372 = vmatpush.msra.mxu0 %v68
  %373 = vmatpush.msra.mxu0 %v67
  %374 = vmatpush.msra.mxu0 %v66
  %375 = vmatpush.msra.mxu0 %v65
  %376 = vmatpush.msra.mxu0 %v64
  %377 = vmatpush.msra.mxu0 %v63
  %378 = vmatpush.msra.mxu0 %v62
  %379 = vmatpush.msra.mxu0 %v61
  %380 = vmatpush.msra.mxu0 %v60
  %381 = vmatpush.msra.mxu0 %v59
  %382 = vmatpush.msra.mxu0 %v58
  %383 = vmatmul.f32.gmra.mxu0 %v295
  %v384 = vpop.f32.mrf.mxu0
  %v385 = vadd.f32 %v365, %v384
  %386 = vdwg.mxu0
  %387 = vmatpush.msra.mxu0 %v89
  %388 = vmatpush.msra.mxu0 %v88
  %389 = vmatpush.msra.mxu0 %v87
  %390 = vmatpush.msra.mxu0 %v86
  %391 = vmatpush.msra.mxu0 %v85
  %392 = vmatpush.msra.mxu0 %v84
  %393 = vmatpush.msra.mxu0 %v83
  %394 = vmatpush.msra.mxu0 %v82
  %395 = vmatpush.msra.mxu0 %v81
  %396 = vmatpush.msra.mxu0 %v80
  %397 = vmatpush.msra.mxu0 %v79
  %398 = vmatpush.msra.mxu0 %v78
  %399 = vmatpush.msra.mxu0 %v77
  %400 = vmatpush.msra.mxu0 %v76
  %401 = vmatpush.msra.mxu0 %v75
  %402 = vmatpush.msra.mxu0 %v74
  %403 = vmatmul.f32.gmra.mxu0 %v296
  %v404 = vpop.f32.mrf.mxu0
  %v405 = vadd.f32 %v385, %v404
  %406 = vdwg.mxu0
  %407 = vmatpush.msra.mxu0 %v105
  %408 = vmatpush.msra.mxu0 %v104
  %409 = vmatpush.msra.mxu0 %v103
  %410 = vmatpush.msra.mxu0 %v102
  %411 = vmatpush.msra.mxu0 %v101
  %412 = vmatpush.msra.mxu0 %v100
  %413 = vmatpush.msra.mxu0 %v99
  %414 = vmatpush.msra.mxu0 %v98
  %415 = vmatpush.msra.mxu0 %v97
  %416 = vmatpush.msra.mxu0 %v96
  %417 = vmatpush.msra.mxu0 %v95
  %418 = vmatpush.msra.mxu0 %v94
  %419 = vmatpush.msra.mxu0 %v93
  %420 = vmatpush.msra.mxu0 %v92
  %421 = vmatpush.msra.mxu0 %v91
  %422 = vmatpush.msra.mxu0 %v90
  %423 = vmatmul.f32.gmra.mxu0 %v297
  %v424 = vpop.f32.mrf.mxu0
  %v425 = vadd.f32 %v405, %v424
  %426 = vdwg.mxu0
  %427 = vmatpush.msra.mxu0 %v121
  %428 = vmatpush.msra.mxu0 %v120
  %429 = vmatpush.msra.mxu0 %v119
  %430 = vmatpush.msra.mxu0 %v118
  %431 = vmatpush.msra.mxu0 %v117
  %432 = vmatpush.msra.mxu0 %v116
  %433 = vmatpush.msra.mxu0 %v115
  %434 = vmatpush.msra.mxu0 %v114
  %435 = vmatpush.msra.mxu0 %v113
  %436 = vmatpush.msra.mxu0 %v112
  %437 = vmatpush.msra.mxu0 %v111
  %438 = vmatpush.msra.mxu0 %v110
  %439 = vmatpush.msra.mxu0 %v109
  %440 = vmatpush.msra.mxu0 %v108
  %441 = vmatpush.msra.mxu0 %v107
  %442 = vmatpush.msra.mxu0 %v106
  %443 = vmatmul.f32.gmra.mxu0 %v298
  %v444 = vpop.f32.mrf.mxu0
  %v445 = vadd.f32 %v425, %v444
  %446 = vdwg.mxu0
  %447 = vmatpush.msra.mxu0 %v137
  %448 = vmatpush.msra.mxu0 %v136
  %449 = vmatpush.msra.mxu0 %v135
  %450 = vmatpush.msra.mxu0 %v134
  %451 = vmatpush.msra.mxu0 %v133
  %452 = vmatpush.msra.mxu0 %v132
  %453 = vmatpush.msra.mxu0 %v131
  %454 = vmatpush.msra.mxu0 %v130
  %455 = vmatpush.msra.mxu0 %v129
  %456 = vmatpush.msra.mxu0 %v128
  %457 = vmatpush.msra.mxu0 %v127
  %458 = vmatpush.msra.mxu0 %v126
  %459 = vmatpush.msra.mxu0 %v125
  %460 = vmatpush.msra.mxu0 %v124
  %461 = vmatpush.msra.mxu0 %v123
  %462 = vmatpush.msra.mxu0 %v122
  %463 = vmatmul.f32.gmra.mxu0 %v299
  %v464 = vpop.f32.mrf.mxu0
  %v465 = vadd.f32 %v445, %v464
  %466 = vdwg.mxu0
  %467 = vmatpush.msra.mxu0 %v153
  %468 = vmatpush.msra.mxu0 %v152
  %469 = vmatpush.msra.mxu0 %v151
  %470 = vmatpush.msra.mxu0 %v150
  %471 = vmatpush.msra.mxu0 %v149
  %472 = vmatpush.msra.mxu0 %v148
  %473 = vmatpush.msra.mxu0 %v147
  %474 = vmatpush.msra.mxu0 %v146
  %475 = vmatpush.msra.mxu0 %v145
  %476 = vmatpush.msra.mxu0 %v144
  %477 = vmatpush.msra.mxu0 %v143
  %478 = vmatpush.msra.mxu0 %v142
  %479 = vmatpush.msra.mxu0 %v141
  %480 = vmatpush.msra.mxu0 %v140
  %481 = vmatpush.msra.mxu0 %v139
  %482 = vmatpush.msra.mxu0 %v138
  %483 = vmatmul.f32.gmra.mxu0 %v300
  %v484 = vpop.f32.mrf.mxu0
  %v485 = vadd.f32 %v465, %v484
  %486 = vdwg.mxu0
  %487 = vmatpush.msra.mxu0 %v169
  %488 = vmatpush.msra.mxu0 %v168
  %489 = vmatpush.msra.mxu0 %v167
  %490 = vmatpush.msra.mxu0 %v166
  %491 = vmatpush.msra.mxu0 %v165
  %492 = vmatpush.msra.mxu0 %v164
  %493 = vmatpush.msra.mxu0 %v163
  %494 = vmatpush.msra.mxu0 %v162
  %495 = vmatpush.msra.mxu0 %v161
  %496 = vmatpush.msra.mxu0 %v160
  %497 = vmatpush.msra.mxu0 %v159
  %498 = vmatpush.msra.mxu0 %v158
  %499 = vmatpush.msra.mxu0 %v157
  %500 = vmatpush.msra.mxu0 %v156
  %501 = vmatpush.msra.mxu0 %v155
  %502 = vmatpush.msra.mxu0 %v154
  %503 = vmatmul.f32.gmra.mxu0 %v303
  %v504 = vpop.f32.mrf.mxu0
  %v505 = vadd.f32 %v485, %v504
  %506 = vdwg.mxu0
  %507 = vmatpush.msra.mxu0 %v185
  %508 = vmatpush.msra.mxu0 %v184
  %509 = vmatpush.msra.mxu0 %v183
  %510 = vmatpush.msra.mxu0 %v182
  %511 = vmatpush.msra.mxu0 %v181
  %512 = vmatpush.msra.mxu0 %v180
  %513 = vmatpush.msra.mxu0 %v179
  %514 = vmatpush.msra.mxu0 %v178
  %515 = vmatpush.msra.mxu0 %v177
  %516 = vmatpush.msra.mxu0 %v176
  %517 = vmatpush.msra.mxu0 %v175
  %518 = vmatpush.msra.mxu0 %v174
  %519 = vmatpush.msra.mxu0 %v173
  %520 = vmatpush.msra.mxu0 %v172
  %521 = vmatpush.msra.mxu0 %v171
  %522 = vmatpush.msra.mxu0 %v170
  %523 = vmatmul.f32.gmra.mxu0 %v304
  %v524 = vpop.f32.mrf.mxu0
  %v525 = vadd.f32 %v505, %v524
  %526 = vdwg.mxu0
  %527 = vmatpush.msra.mxu0 %v201
  %528 = vmatpush.msra.mxu0 %v200
  %529 = vmatpush.msra.mxu0 %v199
  %530 = vmatpush.msra.mxu0 %v198
  %531 = vmatpush.msra.mxu0 %v197
  %532 = vmatpush.msra.mxu0 %v196
  %533 = vmatpush.msra.mxu0 %v195
  %534 = vmatpush.msra.mxu0 %v194
  %535 = vmatpush.msra.mxu0 %v193
  %536 = vmatpush.msra.mxu0 %v192
  %537 = vmatpush.msra.mxu0 %v191
  %538 = vmatpush.msra.mxu0 %v190
  %539 = vmatpush.msra.mxu0 %v189
  %540 = vmatpush.msra.mxu0 %v188
  %541 = vmatpush.msra.mxu0 %v187
  %542 = vmatpush.msra.mxu0 %v186
  %543 = vmatmul.f32.gmra.mxu0 %v305
  %v544 = vpop.f32.mrf.mxu0
  %v545 = vadd.f32 %v525, %v544
  %546 = vdwg.mxu0
  %547 = vmatpush.msra.mxu0 %v217
  %548 = vmatpush.msra.mxu0 %v216
  %549 = vmatpush.msra.mxu0 %v215
  %550 = vmatpush.msra.mxu0 %v214
  %551 = vmatpush.msra.mxu0 %v213
  %552 = vmatpush.msra.mxu0 %v212
  %553 = vmatpush.msra.mxu0 %v211
  %554 = vmatpush.msra.mxu0 %v210
  %555 = vmatpush.msra.mxu0 %v209
  %556 = vmatpush.msra.mxu0 %v208
  %557 = vmatpush.msra.mxu0 %v207
  %558 = vmatpush.msra.mxu0 %v206
  %559 = vmatpush.msra.mxu0 %v205
  %560 = vmatpush.msra.mxu0 %v204
  %561 = vmatpush.msra.mxu0 %v203
  %562 = vmatpush.msra.mxu0 %v202
  %563 = vmatmul.f32.gmra.mxu0 %v306
  %v564 = vpop.f32.mrf.mxu0
  %v565 = vadd.f32 %v545, %v564
  %566 = vdwg.mxu0
  %567 = vmatpush.msra.mxu0 %v233
  %568 = vmatpush.msra.mxu0 %v232
  %569 = vmatpush.msra.mxu0 %v231
  %570 = vmatpush.msra.mxu0 %v230
  %571 = vmatpush.msra.mxu0 %v229
  %572 = vmatpush.msra.mxu0 %v228
  %573 = vmatpush.msra.mxu0 %v227
  %574 = vmatpush.msra.mxu0 %v226
  %575 = vmatpush.msra.mxu0 %v225
  %576 = vmatpush.msra.mxu0 %v224
  %577 = vmatpush.msra.mxu0 %v223
  %578 = vmatpush.msra.mxu0 %v222
  %579 = vmatpush.msra.mxu0 %v221
  %580 = vmatpush.msra.mxu0 %v220
  %581 = vmatpush.msra.mxu0 %v219
  %582 = vmatpush.msra.mxu0 %v218
  %583 = vmatmul.f32.gmra.mxu0 %v307
  %v584 = vpop.f32.mrf.mxu0
  %v585 = vadd.f32 %v565, %v584
  %586 = vdwg.mxu0
  %587 = vmatpush.msra.mxu0 %v249
  %588 = vmatpush.msra.mxu0 %v248
  %589 = vmatpush.msra.mxu0 %v247
  %590 = vmatpush.msra.mxu0 %v246
  %591 = vmatpush.msra.mxu0 %v245
  %592 = vmatpush.msra.mxu0 %v244
  %593 = vmatpush.msra.mxu0 %v243
  %594 = vmatpush.msra.mxu0 %v242
  %595 = vmatpush.msra.mxu0 %v241
  %596 = vmatpush.msra.mxu0 %v240
  %597 = vmatpush.msra.mxu0 %v239
  %598 = vmatpush.msra.mxu0 %v238
  %599 = vmatpush.msra.mxu0 %v237
  %600 = vmatpush.msra.mxu0 %v236
  %601 = vmatpush.msra.mxu0 %v235
  %602 = vmatpush.msra.mxu0 %v234
  %603 = vmatmul.f32.gmra.mxu0 %v308
  %v604 = vpop.f32.mrf.mxu0
  %v605 = vadd.f32 %v585, %v604
  %606 = vdwg.mxu0
  %607 = vmatpush.msra.mxu0 %v265
  %608 = vmatpush.msra.mxu0 %v264
  %609 = vmatpush.msra.mxu0 %v263
  %610 = vmatpush.msra.mxu0 %v262
  %611 = vmatpush.msra.mxu0 %v261
  %612 = vmatpush.msra.mxu0 %v260
  %613 = vmatpush.msra.mxu0 %v259
  %614 = vmatpush.msra.mxu0 %v258
  %615 = vmatpush.msra.mxu0 %v257
  %616 = vmatpush.msra.mxu0 %v256
  %617 = vmatpush.msra.mxu0 %v255
  %618 = vmatpush.msra.mxu0 %v254
  %619 = vmatpush.msra.mxu0 %v253
  %620 = vmatpush.msra.mxu0 %v252
  %621 = vmatpush.msra.mxu0 %v251
  %622 = vmatpush.msra.mxu0 %v250
  %623 = vmatmul.f32.gmra.mxu0 %v309
  %v624 = vpop.f32.mrf.mxu0
  %v625 = vadd.f32 %v605, %v624
  %626 = vdwg.mxu0
  %627 = vmatpush.msra.mxu0 %v281
  %628 = vmatpush.msra.mxu0 %v280
  %629 = vmatpush.msra.mxu0 %v279
  %630 = vmatpush.msra.mxu0 %v278
  %631 = vmatpush.msra.mxu0 %v277
  %632 = vmatpush.msra.mxu0 %v276
  %633 = vmatpush.msra.mxu0 %v275
  %634 = vmatpush.msra.mxu0 %v274
  %635 = vmatpush.msra.mxu0 %v273
  %636 = vmatpush.msra.mxu0 %v272
  %637 = vmatpush.msra.mxu0 %v271
  %638 = vmatpush.msra.mxu0 %v270
  %639 = vmatpush.msra.mxu0 %v269
  %640 = vmatpush.msra.mxu0 %v268
  %641 = vmatpush.msra.mxu0 %v267
  %642 = vmatpush.msra.mxu0 %v266
  %643 = vmatmul.f32.gmra.mxu0 %v310
  %v644 = vpop.f32.mrf.mxu0
  %v645 = vadd.f32 %v625, %v644
  %646 = vdwg.mxu0
  %v647 = vmax.f32 %v645, 0.0
  %v648 = vld [vmem:[%s3] sm:$0x1]
  %v650 = vperm.slane %v648, 0
  %v652 = vmul.f32 %v647, %v650
  %vm653 = vcmask 517120
  %v654 = vsel %vm653, %v652, 0.0
  %655 = vadd.xlane.f32.xlu0 %v654
  %v656 = vpop.xlane.xlu0 %655
  %v657 = vld [vmem:[#allocation2] sm:$0x1]
  %v659 = vperm.slane %v657, 0
  %v661 = vadd.f32 %v656, %v659
  %v662 = vmul.f32 %v661, 0.5
  %v663 = vtanh.pop %v662
  %v664 = vadd.f32 %v663, 1.0
  %v665 = vmul.f32 %v664, 0.5
  %vm666 = vcmask 1024
  %667 = vst.msk [vmem:[%s5] sm:$0x3] %vm666, %v665
  // Predicated region
  $region22: #{binary_classifier_forward.3} parent=0 // pred_check
    _
  $region23: #{binary_classifier_forward.3} parent=0 // pred_check_branch
    %669 = sbr.rel (0) target = $region25
  $region24: #{binary_classifier_forward.3} parent=0 // pred_region
    _
  $region25: #{binary_classifier_forward.3} parent=0 // pred_fallthru
    _
  // Predicated region
  $region26: #{binary_classifier_forward.3} parent=0 // pred_check
    _
  $region27: #{binary_classifier_forward.3} parent=0 // pred_check_branch
    %671 = sbr.rel (0) target = $region29
  $region28: #{binary_classifier_forward.3} parent=0 // pred_region
    _
  $region29: #{binary_classifier_forward.3} parent=0 // pred_fallthru
    _

</llo_original>
